<compile_context>
chip_gen: v7x
topology: tpu7x:2x2x1
jax: 0.10.0
libtpu: 0.0.40
codegen_flags: <defaults>
</compile_context>

<pallas_src>
import jax
import jax.numpy as jnp
from jax import lax
from jax.experimental import pallas as pl
from jax.experimental.pallas import tpu as pltpu


# ----------------------------------------------------------------------------
# Fused kernel: weighted MSE + weighted CE + total, one launch, one grid step.
# ----------------------------------------------------------------------------
def _fused_loss_kernel(cls_tgt_ref,          # (B,)  int32, SMEM (scalar prefetch)
                       scales_ref,           # (2,)  f32,  SMEM: [w_mse/n, w_ce/B]
                       pred_ref, tgt_ref,    # regression slabs, VMEM
                       logits_ref,           # (B,C) f32, VMEM
                       out_ref):             # (3,)  f32, SMEM
    mse_scale = scales_ref[0]
    ce_scale = scales_ref[1]

    # ---- head 0: MSE (sum of squared diffs * weight / n_elem) ---------------
    # Explicit f32 widening so bf16 inputs stay correct on v5e (no bf16 VPU).
    # Keep VPU mul + XLU reduce — do NOT route this tiny SSE through the MXU.
    d = pred_ref[...].astype(jnp.float32) - tgt_ref[...].astype(jnp.float32)
    w_mse_loss = jnp.sum(d * d) * mse_scale

    # ---- head 1: cross-entropy (log-softmax + target pick, batch mean) ------
    logits = logits_ref[...].astype(jnp.float32)            # (B, C)
    b, c = logits.shape
    m = jnp.max(logits, axis=-1, keepdims=True)
    shifted = logits - m
    lse = jnp.log(jnp.sum(jnp.exp(shifted), axis=-1, keepdims=True))   # (B, 1)

    # Materialize SMEM targets as a (B,1) column: B scalar reads + B selects on
    # one masked vreg.  The (B,C)-scale work below is a single compare/select.
    row_ids = lax.broadcasted_iota(jnp.int32, (b, 1), 0)
    tgt_col = jnp.zeros((b, 1), jnp.int32)
    for i in range(b):
        tgt_col = jnp.where(row_ids == i, cls_tgt_ref[i], tgt_col)

    cols = lax.broadcasted_iota(jnp.int32, (b, c), 1)
    picked = jnp.where(cols == tgt_col, shifted, 0.0)        # (B, C)
    nll_sum = jnp.sum(lse) - jnp.sum(picked)                 # sum_i (lse_i - s[i,t_i])
    w_ce_loss = nll_sum * ce_scale

    out_ref[0] = w_mse_loss
    out_ref[1] = w_ce_loss
    out_ref[2] = w_mse_loss + w_ce_loss


def _vmem_in_spec(block_shape, index_map):
    """VMEM input spec; grid=(1,) has nothing to prefetch -> single buffer."""
    try:
        return pl.BlockSpec(block_shape, index_map, pipeline_mode=pl.Buffered(1))
    except TypeError:  # older BlockSpec without pipeline_mode kwarg
        return pl.BlockSpec(block_shape, index_map)


@jax.jit
def fused_weighted_losses(pred, pred_tgt, logits, cls_tgt, weights):
    """Returns (weighted_mse, weighted_ce, total) from one pallas_call.

    weights: (2,) f32 array [w_mse, w_ce] — dynamic, no recompile on change.
    """
    n_elem = pred.size
    b, c = logits.shape

    # No padding: free bitcast reshape to a lane-dense slab when divisible,
    # else pass the original ND arrays as a single full-array block.
    if n_elem % 128 == 0 and n_elem >= 128:
        xp = pred.reshape(n_elem // 128, 128)
        yp = pred_tgt.reshape(n_elem // 128, 128)
    else:
        xp = pred if pred.ndim >= 2 else pred.reshape(1, -1)
        yp = pred_tgt if pred_tgt.ndim >= 2 else pred_tgt.reshape(1, -1)
    nd = xp.ndim

    # Pre-divided scales shipped via SMEM (weights may be scheduled per-step).
    scales = weights.astype(jnp.float32) * jnp.array(
        [1.0 / float(n_elem), 1.0 / float(b)], jnp.float32)

    # Advisory cost so XLA treats this custom call as cheap & memory-light.
    cost = pl.CostEstimate(
        flops=int(3 * n_elem + 6 * b * c),
        transcendentals=int(b * c),
        bytes_accessed=int(8 * n_elem + 4 * b * c + 4 * b + 8),
    )

    # Raise the scoped VMEM limit only when the single-block design would
    # exceed the smallest default (v5e: 16 MiB).  2x headroom covers buffering.
    in_bytes = 4 * (xp.size + yp.size + logits.size)
    needed = 2 * in_bytes + (2 << 20)
    vmem_limit = int(min(needed, 100 << 20)) if needed > (16 << 20) else None

    out = pl.pallas_call(
        _fused_loss_kernel,
        out_shape=jax.ShapeDtypeStruct((3,), jnp.float32),
        grid_spec=pltpu.PrefetchScalarGridSpec(
            num_scalar_prefetch=1,            # class targets -> SMEM
            grid=(1,),                        # single step: everything fits VMEM
            in_specs=[
                pl.BlockSpec(memory_space=pltpu.MemorySpace.SMEM),   # scales
                _vmem_in_spec(xp.shape, lambda i, t, _nd=nd: (0,) * _nd),
                _vmem_in_spec(yp.shape, lambda i, t, _nd=nd: (0,) * _nd),
                _vmem_in_spec((b, c), lambda i, t: (0, 0)),
            ],
            # Scalar results through SMEM: avoids masked 1-lane VMEM writeback.
            out_specs=pl.BlockSpec(memory_space=pltpu.MemorySpace.SMEM),
        ),
        compiler_params=pltpu.CompilerParams(
            dimension_semantics=("arbitrary",),
            vmem_limit_bytes=vmem_limit),
        cost_estimate=cost,
    )(cls_tgt.astype(jnp.int32), scales, xp, yp, logits)

    return out[0], out[1], out[2]


# ----------------------------------------------------------------------------
# ParallelCriterion: same forward contract as the PyTorch module.
# ----------------------------------------------------------------------------
class ParallelCriterion:
    """JAX/Pallas port of ParallelCriterion, specialized + fused for the
    two-head [MSE regression, CrossEntropy classification] configuration.

    forward(output, target) -> (total_loss, {name: weighted_loss})
      output: [pred_nchw, logits]
      target: [(tgt_nchw,), (class_targets,)]
    """

    def __init__(self, loss_weights, loss_names=None):
        assert len(loss_weights) == 2
        self.loss_weights = tuple(float(w) for w in loss_weights)
        # Weights reach the kernel through SMEM, so rescheduling them between
        # steps does not force a recompile.
        self._weights = jnp.asarray(self.loss_weights, dtype=jnp.float32)
        self._loss_names = list(loss_names) if loss_names else ["mse", "ce"]
        assert len(self._loss_names) == 2

    @property
    def loss_names(self):
        return self._loss_names

    def _fused(self, output, target):
        return fused_weighted_losses(
            output[0], target[0][0], output[1], target[1][0], self._weights)

    def compute_split_loss(self, output, target):
        w_mse, w_ce, _ = self._fused(output, target)
        return {self._loss_names[0]: w_mse, self._loss_names[1]: w_ce}

    def forward(self, *inputs):
        output, target = inputs
        w_mse, w_ce, total = self._fused(output, target)
        split_loss = {self._loss_names[0]: w_mse, self._loss_names[1]: w_ce}
        return total, split_loss

    __call__ = forward


if __name__ == "__main__":
    key = jax.random.PRNGKey(0)
    k1, k2, k3, k4 = jax.random.split(key, 4)

    # Head 0: regression, NCHW (batch=2, channels=4, spatial=16x16)
    pred0 = jax.random.normal(k1, (2, 4, 16, 16), dtype=jnp.float32)
    tgt0 = jax.random.normal(k2, (2, 4, 16, 16), dtype=jnp.float32)

    # Head 1: classification, logits (batch=8, classes=32), int targets
    logits1 = jax.random.normal(k3, (8, 32), dtype=jnp.float32)
    tgt1 = jax.random.randint(k4, (8,), 0, 32, dtype=jnp.int32)

    criterion = ParallelCriterion(loss_weights=[0.5, 2.0],
                                  loss_names=["mse", "ce"])

    output = [pred0, logits1]
    target = [(tgt0,), (tgt1,)]

    total_loss, split_loss = criterion(output, target)
    total_loss = jax.block_until_ready(total_loss)
    split_loss = {k: jax.block_until_ready(v) for k, v in split_loss.items()}

    # Reference check against plain-JAX implementations of the PyTorch losses.
    ref_mse = 0.5 * jnp.mean((pred0 - tgt0) ** 2)
    ref_logp = jax.nn.log_softmax(logits1, axis=-1)
    ref_ce = 2.0 * jnp.mean(-ref_logp[jnp.arange(8), tgt1])
    ref_total = ref_mse + ref_ce

    assert jnp.allclose(split_loss["mse"], ref_mse, rtol=1e-5, atol=1e-5)
    assert jnp.allclose(split_loss["ce"], ref_ce, rtol=1e-5, atol=1e-5)
    assert jnp.allclose(total_loss, ref_total, rtol=1e-5, atol=1e-5)

    print("KERNEL_OK")
</pallas_src>

<mosaic_0001>
module attributes {stable_mosaic.version = 11 : i64} {
  func.func @_fused_loss_kernel(%arg0: i32, %arg1: memref<8xi32, #tpu.memory_space<smem>>, %arg2: memref<2xf32, #tpu.memory_space<smem>>, %arg3: memref<16x128xf32, #tpu.memory_space<vmem>>, %arg4: memref<16x128xf32, #tpu.memory_space<vmem>>, %arg5: memref<8x32xf32, #tpu.memory_space<vmem>>, %arg6: memref<3xf32, #tpu.memory_space<smem>>) attributes {dimension_semantics = [#tpu.dimension_semantics<arbitrary>], iteration_bounds = array<i64: 1>, scalar_prefetch = 1 : i64, scratch_operands = 0 : i64, tpu.core_type = #tpu.core_type<tc>, window_params = [{transform_indices = @transform_0, window_bounds = array<i64: 2>}, {pipeline_mode = #tpu.pipeline_mode<synchronous>, transform_indices = @transform_1, window_bounds = array<i64: 16, 128>}, {pipeline_mode = #tpu.pipeline_mode<synchronous>, transform_indices = @transform_2, window_bounds = array<i64: 16, 128>}, {pipeline_mode = #tpu.pipeline_mode<synchronous>, transform_indices = @transform_3, window_bounds = array<i64: 8, 32>}, {transform_indices = @transform_4, window_bounds = array<i64: 3>}]} {
    %c0 = arith.constant 0 : index
    %0 = memref.load %arg2[%c0] : memref<2xf32, #tpu.memory_space<smem>>
    %c1 = arith.constant 1 : index
    %1 = memref.load %arg2[%c1] : memref<2xf32, #tpu.memory_space<smem>>
    %c0_0 = arith.constant 0 : index
    %c0_1 = arith.constant 0 : index
    %2 = vector.load %arg3[%c0_0, %c0_1] : memref<16x128xf32, #tpu.memory_space<vmem>>, vector<16x128xf32>
    %c0_2 = arith.constant 0 : index
    %c0_3 = arith.constant 0 : index
    %3 = vector.load %arg4[%c0_2, %c0_3] : memref<16x128xf32, #tpu.memory_space<vmem>>, vector<16x128xf32>
    %4 = arith.subf %2, %3 : vector<16x128xf32>
    %5 = arith.mulf %4, %4 : vector<16x128xf32>
    %6 = vector.shape_cast %5 : vector<16x128xf32> to vector<1x16x128xf32>
    %cst = arith.constant dense<0.000000e+00> : vector<1xf32>
    %7 = vector.multi_reduction <add>, %6, %cst [1, 2] : vector<1x16x128xf32> to vector<1xf32>
    %8 = vector.shape_cast %7 : vector<1xf32> to vector<1x1x1xf32>
    %9 = vector.extract %8[0, 0, 0] : f32 from vector<1x1x1xf32>
    %10 = arith.mulf %9, %0 : f32
    %c0_4 = arith.constant 0 : index
    %c0_5 = arith.constant 0 : index
    %11 = vector.load %arg5[%c0_4, %c0_5] : memref<8x32xf32, #tpu.memory_space<vmem>>, vector<8x32xf32>
    %cst_6 = arith.constant dense<0xFF800000> : vector<8xf32>
    %12 = vector.multi_reduction <maximumf>, %11, %cst_6 [1] : vector<8x32xf32> to vector<8xf32>
    %13 = vector.shape_cast %12 : vector<8xf32> to vector<8x1xf32>
    %14 = vector.broadcast %13 : vector<8x1xf32> to vector<8x32xf32>
    %15 = arith.subf %11, %14 : vector<8x32xf32>
    %16 = math.exp %15 : vector<8x32xf32>
    %cst_7 = arith.constant dense<0.000000e+00> : vector<8xf32>
    %17 = vector.multi_reduction <add>, %16, %cst_7 [1] : vector<8x32xf32> to vector<8xf32>
    %18 = vector.shape_cast %17 : vector<8xf32> to vector<8x1xf32>
    %19 = math.log %18 : vector<8x1xf32>
    %20 = tpu.iota {dimensions = array<i32: 0>} : vector<8x1xi32>
    %c0_i32 = arith.constant 0 : i32
    %21 = vector.broadcast %c0_i32 : i32 to vector<8x1xi32>
    %c0_i32_8 = arith.constant 0 : i32
    %22 = vector.broadcast %c0_i32_8 : i32 to vector<8x1xi32>
    %23 = arith.cmpi eq, %20, %22 : vector<8x1xi32>
    %c0_9 = arith.constant 0 : index
    %24 = memref.load %arg1[%c0_9] : memref<8xi32, #tpu.memory_space<smem>>
    %25 = vector.broadcast %24 : i32 to vector<8x1xi32>
    %26 = arith.select %23, %25, %21 : vector<8x1xi1>, vector<8x1xi32>
    %c1_i32 = arith.constant 1 : i32
    %27 = vector.broadcast %c1_i32 : i32 to vector<8x1xi32>
    %28 = arith.cmpi eq, %20, %27 : vector<8x1xi32>
    %c1_10 = arith.constant 1 : index
    %29 = memref.load %arg1[%c1_10] : memref<8xi32, #tpu.memory_space<smem>>
    %30 = vector.broadcast %29 : i32 to vector<8x1xi32>
    %31 = arith.select %28, %30, %26 : vector<8x1xi1>, vector<8x1xi32>
    %c2_i32 = arith.constant 2 : i32
    %32 = vector.broadcast %c2_i32 : i32 to vector<8x1xi32>
    %33 = arith.cmpi eq, %20, %32 : vector<8x1xi32>
    %c2 = arith.constant 2 : index
    %34 = memref.load %arg1[%c2] : memref<8xi32, #tpu.memory_space<smem>>
    %35 = vector.broadcast %34 : i32 to vector<8x1xi32>
    %36 = arith.select %33, %35, %31 : vector<8x1xi1>, vector<8x1xi32>
    %c3_i32 = arith.constant 3 : i32
    %37 = vector.broadcast %c3_i32 : i32 to vector<8x1xi32>
    %38 = arith.cmpi eq, %20, %37 : vector<8x1xi32>
    %c3 = arith.constant 3 : index
    %39 = memref.load %arg1[%c3] : memref<8xi32, #tpu.memory_space<smem>>
    %40 = vector.broadcast %39 : i32 to vector<8x1xi32>
    %41 = arith.select %38, %40, %36 : vector<8x1xi1>, vector<8x1xi32>
    %c4_i32 = arith.constant 4 : i32
    %42 = vector.broadcast %c4_i32 : i32 to vector<8x1xi32>
    %43 = arith.cmpi eq, %20, %42 : vector<8x1xi32>
    %c4 = arith.constant 4 : index
    %44 = memref.load %arg1[%c4] : memref<8xi32, #tpu.memory_space<smem>>
    %45 = vector.broadcast %44 : i32 to vector<8x1xi32>
    %46 = arith.select %43, %45, %41 : vector<8x1xi1>, vector<8x1xi32>
    %c5_i32 = arith.constant 5 : i32
    %47 = vector.broadcast %c5_i32 : i32 to vector<8x1xi32>
    %48 = arith.cmpi eq, %20, %47 : vector<8x1xi32>
    %c5 = arith.constant 5 : index
    %49 = memref.load %arg1[%c5] : memref<8xi32, #tpu.memory_space<smem>>
    %50 = vector.broadcast %49 : i32 to vector<8x1xi32>
    %51 = arith.select %48, %50, %46 : vector<8x1xi1>, vector<8x1xi32>
    %c6_i32 = arith.constant 6 : i32
    %52 = vector.broadcast %c6_i32 : i32 to vector<8x1xi32>
    %53 = arith.cmpi eq, %20, %52 : vector<8x1xi32>
    %c6 = arith.constant 6 : index
    %54 = memref.load %arg1[%c6] : memref<8xi32, #tpu.memory_space<smem>>
    %55 = vector.broadcast %54 : i32 to vector<8x1xi32>
    %56 = arith.select %53, %55, %51 : vector<8x1xi1>, vector<8x1xi32>
    %c7_i32 = arith.constant 7 : i32
    %57 = vector.broadcast %c7_i32 : i32 to vector<8x1xi32>
    %58 = arith.cmpi eq, %20, %57 : vector<8x1xi32>
    %c7 = arith.constant 7 : index
    %59 = memref.load %arg1[%c7] : memref<8xi32, #tpu.memory_space<smem>>
    %60 = vector.broadcast %59 : i32 to vector<8x1xi32>
    %61 = arith.select %58, %60, %56 : vector<8x1xi1>, vector<8x1xi32>
    %62 = tpu.iota {dimensions = array<i32: 1>} : vector<8x32xi32>
    %63 = vector.broadcast %61 : vector<8x1xi32> to vector<8x32xi32>
    %64 = arith.cmpi eq, %62, %63 : vector<8x32xi32>
    %cst_11 = arith.constant 0.000000e+00 : f32
    %65 = vector.broadcast %cst_11 : f32 to vector<8x32xf32>
    %66 = arith.select %64, %15, %65 : vector<8x32xi1>, vector<8x32xf32>
    %67 = vector.shape_cast %19 : vector<8x1xf32> to vector<1x8x1xf32>
    %cst_12 = arith.constant dense<0.000000e+00> : vector<1xf32>
    %68 = vector.multi_reduction <add>, %67, %cst_12 [1, 2] : vector<1x8x1xf32> to vector<1xf32>
    %69 = vector.shape_cast %68 : vector<1xf32> to vector<1x1x1xf32>
    %70 = vector.extract %69[0, 0, 0] : f32 from vector<1x1x1xf32>
    %71 = vector.shape_cast %66 : vector<8x32xf32> to vector<1x8x32xf32>
    %cst_13 = arith.constant dense<0.000000e+00> : vector<1xf32>
    %72 = vector.multi_reduction <add>, %71, %cst_13 [1, 2] : vector<1x8x32xf32> to vector<1xf32>
    %73 = vector.shape_cast %72 : vector<1xf32> to vector<1x1x1xf32>
    %74 = vector.extract %73[0, 0, 0] : f32 from vector<1x1x1xf32>
    %75 = arith.subf %70, %74 : f32
    %76 = arith.mulf %75, %1 : f32
    %c0_14 = arith.constant 0 : index
    %77 = memref.load %arg6[%c0_14] : memref<3xf32, #tpu.memory_space<smem>>
    memref.store %10, %arg6[%c0_14] : memref<3xf32, #tpu.memory_space<smem>>
    %c1_15 = arith.constant 1 : index
    %78 = memref.load %arg6[%c1_15] : memref<3xf32, #tpu.memory_space<smem>>
    memref.store %76, %arg6[%c1_15] : memref<3xf32, #tpu.memory_space<smem>>
    %79 = arith.addf %10, %76 : f32
    %c2_16 = arith.constant 2 : index
    %80 = memref.load %arg6[%c2_16] : memref<3xf32, #tpu.memory_space<smem>>
    memref.store %79, %arg6[%c2_16] : memref<3xf32, #tpu.memory_space<smem>>
    return
  }
  func.func @transform_0(%arg0: i32, %arg1: memref<8xi32, #tpu.memory_space<smem>>) -> i32 {
    %c0_i32 = arith.constant 0 : i32
    %c0_i32_0 = arith.constant 0 : i32
    return %c0_i32 : i32
  }
  func.func @transform_1(%arg0: i32, %arg1: memref<8xi32, #tpu.memory_space<smem>>) -> (i32, i32) {
    %c0_i32 = arith.constant 0 : i32
    %c0_i32_0 = arith.constant 0 : i32
    %c0_i32_1 = arith.constant 0 : i32
    return %c0_i32, %c0_i32_0 : i32, i32
  }
  func.func @transform_2(%arg0: i32, %arg1: memref<8xi32, #tpu.memory_space<smem>>) -> (i32, i32) {
    %c0_i32 = arith.constant 0 : i32
    %c0_i32_0 = arith.constant 0 : i32
    %c0_i32_1 = arith.constant 0 : i32
    return %c0_i32, %c0_i32_0 : i32, i32
  }
  func.func @transform_3(%arg0: i32, %arg1: memref<8xi32, #tpu.memory_space<smem>>) -> (i32, i32) {
    %c0_i32 = arith.constant 0 : i32
    %c0_i32_0 = arith.constant 0 : i32
    %c0_i32_1 = arith.constant 0 : i32
    return %c0_i32, %c0_i32_0 : i32, i32
  }
  func.func @transform_4(%arg0: i32, %arg1: memref<8xi32, #tpu.memory_space<smem>>) -> i32 {
    %c0_i32 = arith.constant 0 : i32
    %c0_i32_0 = arith.constant 0 : i32
    return %c0_i32 : i32
  }
}

</mosaic_0001>

<llo_original>
// kernel: mul.1
$region0: #{mul.1}
  #allocation0 [shape = 's32[1]{0}', space=sflag, size = 0x4, scoped, tag = 'scoped memory for mul.1']
  %s0 = inlined_call_operand.vmem [shape: f32[2], index: 0, kind: input, shape index: {}]
  %s1 = inlined_call_operand.vmem [shape: f32[2], index: 1, kind: input, shape index: {}]
  %s2 = inlined_call_operand.vmem [shape: f32[2], index: 2, kind: output, shape index: {}]
  %v3 = vld [vmem:[%s0] sm:$0x1]
  %v4 = vld [vmem:[%s1] sm:$0x1]
  %5 = xla_tuple %v3, %v4
  %6 = xla_tuple %5
  %v7 = vmul.f32 %v3, %v4
  %8 = xla_tuple %v7
  %9 = vst [vmem:[%s2] sm:$0x1] %v7

// kernel: fused_weighted_losses.1
$region0: #{fused_weighted_losses.1}
  #allocation0 [shape = 'u32[]', space=smem, size = 0x4, offset = 0x4, fixed_abs, tag = 'smem constant byte address 0x4 - core index']
  #allocation1 [shape = 'u32[144,128]{1,0:T(1,128)}', space=vmem, size = 0x12000, scoped, tag = 'internal scratch']
  #allocation2 [shape = 's32[1]{0}', space=sflag, size = 0x4, scoped, tag = 'scoped memory for fused_weighted_losses.1']
  #allocation3 [shape = 'u8[512]{0}', space=smem, size = 0x200, scoped, tag = 'prefetched SMEM operand 0']
  %s0 = inlined_call_operand.vmem [shape: s32[8], index: 0, kind: input, shape index: {}]
  %s1 = inlined_call_operand.vmem [shape: f32[2], index: 1, kind: input, shape index: {}]
  %s2 = inlined_call_operand.vmem [shape: f32[16,128], index: 2, kind: input, shape index: {}]
  %s3 = inlined_call_operand.vmem [shape: f32[16,128], index: 3, kind: input, shape index: {}]
  %s4 = inlined_call_operand.vmem [shape: f32[8,32], index: 4, kind: input, shape index: {}]
  %s5 = inlined_call_operand.vmem [shape: f32[3], index: 5, kind: output, shape index: {}]
  %s6 = sld [smem:[#allocation0]]
  $region30: #{fused_weighted_losses.1} parent=0
    _
  %s8 = ssub.s32 1, %s6
  %s9 = scalar_select 0, %s8, %s6
  %s10 = sshll.u32 %s0, 4
  %s11 = int_to_ptr.vmem [resolvable:$true] %s10
  %13 = dma.vmem_to_smem %s11, 16, [#allocation3], [#allocation2]
  %14 = dma.done [#allocation2], 16
  %15 = sfence
  $region1: #{fused_weighted_losses.1} parent=0
    #allocation4 [shape = 'u8[512]{0}', space=smem, size = 0x200, scoped, tag = 'input window, operand 1, single buffered']
    #allocation5 [shape = 's32[1]{0}', space=sflag, size = 0x4, scoped, tag = 'scoped memory for fused_weighted_losses.1']
    #allocation6 [shape = 's32[1]{0}', space=sflag, size = 0x4, scoped, tag = 'scoped memory for fused_weighted_losses.1']
    #allocation7 [shape = 'u8[512]{0}', space=smem, size = 0x200, scoped, tag = 'output window, operand 0, single buffered']
    %16 = vsyncpa [#allocation5], 0
    %17 = vsyncpa [#allocation6], 0
    // Predicated region
    $region2: #{fused_weighted_losses.1} parent=1 // pred_check
      _
    $region3: #{fused_weighted_losses.1} parent=1 // pred_check_branch
      %19 = sbr.rel (0) target = $region5
    $region4: #{fused_weighted_losses.1} parent=1 // pred_region
      %s21 = ssub.s32 16, 16
      %22 = vsyncadd [#allocation5], %s21
      %s24 = sshll.u32 %s1, 4
      %s25 = int_to_ptr.vmem [resolvable:$true] %s24
      %27 = dma.vmem_to_smem %s25, 16, [#allocation4], [#allocation5]
    $region5: #{fused_weighted_losses.1} parent=1 // pred_fallthru
      _
    // Predicated region
    $region6: #{fused_weighted_losses.1} parent=1 // pred_check
      _
    $region7: #{fused_weighted_losses.1} parent=1 // pred_check_branch
      %29 = sbr.rel (0) target = $region9
    $region8: #{fused_weighted_losses.1} parent=1 // pred_region
      _
    $region9: #{fused_weighted_losses.1} parent=1 // pred_fallthru
      _
    // Predicated region
    $region10: #{fused_weighted_losses.1} parent=1 // pred_check
      _
    $region11: #{fused_weighted_losses.1} parent=1 // pred_check_branch
      %31 = sbr.rel (0) target = $region13
    $region12: #{fused_weighted_losses.1} parent=1 // pred_region
      _
    $region13: #{fused_weighted_losses.1} parent=1 // pred_fallthru
      _
    // Predicated region
    $region14: #{fused_weighted_losses.1} parent=1 // pred_check
      _
    $region15: #{fused_weighted_losses.1} parent=1 // pred_check_branch
      %33 = sbr.rel (0) target = $region17
    $region16: #{fused_weighted_losses.1} parent=1 // pred_region
      _
    $region17: #{fused_weighted_losses.1} parent=1 // pred_fallthru
      _
    // Predicated region
    $region18: #{fused_weighted_losses.1} parent=1 // pred_check
      _
    $region19: #{fused_weighted_losses.1} parent=1 // pred_check_branch
      %35 = sbr.rel (0) target = $region21
    $region20: #{fused_weighted_losses.1} parent=1 // pred_region
      %36 = dma.done [#allocation5], 16
    $region21: #{fused_weighted_losses.1} parent=1 // pred_fallthru
      _
    %37 = sfence
    %s38 = sld [smem:[#allocation4]]
    %s39 = sld [smem:[#allocation4 + $0x1]]
    %v40 = vld [vmem:[%s2] sm:$0xff]
    %v41 = vld [vmem:[%s2 + $0x8] sm:$0xff]
    %v42 = vld [vmem:[%s3] sm:$0xff]
    %v43 = vld [vmem:[%s3 + $0x8] sm:$0xff]
    %v44 = vsub.f32 %v40, %v42
    %v45 = vsub.f32 %v41, %v43
    %v46 = vmul.f32 %v44, %v44
    %v47 = vmul.f32 %v45, %v45
    %v48 = vadd.f32 %v46, %v47
    %49 = vadd.xlane.f32.xlu0 %v48
    %v50 = vpop.xlane.xlu0 %49
    %v51 = vrot.slane %v50, 4
    %v52 = vadd.f32 %v50, %v51
    %v53 = vrot.slane %v52, 2
    %v54 = vadd.f32 %v52, %v53
    %v55 = vrot.slane %v54, 1
    %v56 = vadd.f32 %v54, %v55
    %s57 = vtos %v56
    %s58 = smul.f32 %s57, %s38
    %v59 = vld [vmem:[%s4] sm:$0xff]
    %vm60 = vcmask 261120
    %v61 = vsel %vm60, %v59, -inf
    %62 = vmax.xlane.f32.xlu0 %v61
    %v63 = vpop.xlane.xlu0 %62
    %v64 = vsub.f32 %v59, %v63
    %v65 = vmul.f32 %v64, 1.442695
    %v66 = vpow.pop %v65
    %v67 = vsel %vm60, %v66, 0.0
    %68 = vadd.xlane.f32.xlu0 %v67
    %v69 = vpop.xlane.xlu0 %68
    %v70 = vlog2.pop %v69
    %v71 = vmul.f32 %v70, 0.6931472
    %v72 = vlaneseq
    %v73 = vshrl.u32 %v72, 7
    %vm74 = vcmp.eq.s32.totalorder %v73, 0
    %s75 = sld [smem:[#allocation3]]
    %v76 = vstv %s75
    %v77 = vsel %vm74, %v76, 0
    %vm78 = vcmp.eq.s32.totalorder %v73, 1
    %s79 = sld [smem:[#allocation3 + $0x1]]
    %v80 = vstv %s79
    %v81 = vsel %vm78, %v80, %v77
    %vm82 = vcmp.eq.s32.totalorder %v73, 2
    %s83 = sld [smem:[#allocation3 + $0x2]]
    %v84 = vstv %s83
    %v85 = vsel %vm82, %v84, %v81
    %vm86 = vcmp.eq.s32.totalorder %v73, 3
    %s87 = sld [smem:[#allocation3 + $0x3]]
    %v88 = vstv %s87
    %v89 = vsel %vm86, %v88, %v85
    %vm90 = vcmp.eq.s32.totalorder %v73, 4
    %s91 = sld [smem:[#allocation3 + $0x4]]
    %v92 = vstv %s91
    %v93 = vsel %vm90, %v92, %v89
    %vm94 = vcmp.eq.s32.totalorder %v73, 5
    %s95 = sld [smem:[#allocation3 + $0x5]]
    %v96 = vstv %s95
    %v97 = vsel %vm94, %v96, %v93
    %vm98 = vcmp.eq.s32.totalorder %v73, 6
    %s99 = sld [smem:[#allocation3 + $0x6]]
    %v100 = vstv %s99
    %v101 = vsel %vm98, %v100, %v97
    %vm102 = vcmp.eq.s32.totalorder %v73, 7
    %s103 = sld [smem:[#allocation3 + $0x7]]
    %v104 = vstv %s103
    %v105 = vsel %vm102, %v104, %v101
    %v106 = vlaneseq
    %v107 = vand.u32 %v106, 127
    %vm108 = vcmp.eq.s32.totalorder %v107, %v105
    %v109 = vsel %vm108, %v64, 0.0
    %vm110 = vcmask 7168
    %v111 = vsel %vm110, %v71, 0.0
    %112 = vadd.xlane.f32.xlu0 %v111
    %v113 = vpop.xlane.xlu0 %112
    %v114 = vrot.slane %v113, 4
    %v115 = vadd.f32 %v113, %v114
    %v116 = vrot.slane %v115, 2
    %v117 = vadd.f32 %v115, %v116
    %v118 = vrot.slane %v117, 1
    %v119 = vadd.f32 %v117, %v118
    %s120 = vtos %v119
    %v121 = vsel %vm60, %v109, 0.0
    %122 = vadd.xlane.f32.xlu0 %v121
    %v123 = vpop.xlane.xlu0 %122
    %v124 = vrot.slane %v123, 4
    %v125 = vadd.f32 %v123, %v124
    %v126 = vrot.slane %v125, 2
    %v127 = vadd.f32 %v125, %v126
    %v128 = vrot.slane %v127, 1
    %v129 = vadd.f32 %v127, %v128
    %s130 = vtos %v129
    %s131 = ssub.f32 %s120, %s130
    %s132 = smul.f32 %s131, %s39
    %s133 = scalar_lea.smem [#allocation7], 0
    %134 = sst [smem:[%s133]] %s58
    %s135 = scalar_lea.smem [#allocation7], 1
    %136 = sst [smem:[%s135]] %s132
    %s137 = sadd.f32 %s58, %s132
    %s138 = scalar_lea.smem [#allocation7], 2
    %139 = sst [smem:[%s138]] %s137
    // Predicated region
    $region22: #{fused_weighted_losses.1} parent=1 // pred_check
      _
    $region23: #{fused_weighted_losses.1} parent=1 // pred_check_branch
      %141 = sbr.rel (0) target = $region25
    $region24: #{fused_weighted_losses.1} parent=1 // pred_region
      %s143 = ssub.s32 16, 16
      %144 = vsyncadd [#allocation6], %s143
      %s146 = sshll.u32 %s5, 4
      %s147 = int_to_ptr.vmem [resolvable:$true] %s146
      %149 = dma.smem_to_vmem [#allocation7], 16, %s147, [#allocation6]
    $region25: #{fused_weighted_losses.1} parent=1 // pred_fallthru
      _
    // Predicated region
    $region26: #{fused_weighted_losses.1} parent=1 // pred_check
      _
    $region27: #{fused_weighted_losses.1} parent=1 // pred_check_branch
      %151 = sbr.rel (0) target = $region29
    $region28: #{fused_weighted_losses.1} parent=1 // pred_region
      %152 = dma.done [#allocation6], 16
    $region29: #{fused_weighted_losses.1} parent=1 // pred_fallthru
      _
    %153 = sfence
    %154 = vsyncpa [#allocation5], 1
    %155 = vsyncpa [#allocation6], 1

</llo_original>
